<compile_context>
chip_gen: v6e
topology: v6e:2x2x1
jax: 0.10.0
libtpu: 0.0.40
codegen_flags: <defaults>
</compile_context>

<pallas_src>
import jax
import jax.numpy as jnp
from jax.experimental import pallas as pl
from jax.experimental.pallas import tpu as pltpu


# Contract x's last dim with the pre-transposed weight's first dim (plain NN).
_NN_DNUMS = (((1,), (0,)), ((), ()))


def _readout3m_kernel_aligned(x_ref, w_ref, o_ref):
    # x_ref: (tn, in_dim)   w_ref: (in_dim, out3)   o_ref: (tn, out3)
    y = jax.lax.dot_general(
        x_ref[...], w_ref[...], _NN_DNUMS, preferred_element_type=jnp.float32
    )
    o_ref[...] = y.astype(o_ref.dtype)  # full lane-aligned slab store


def _readout3m_kernel_general(x_ref, w_ref, o_ref):
    # x_ref: (B, tn, in_dim)   w_ref: (in_dim, out3)   o_ref: (tn, B*out3)
    w = w_ref[...]
    out3 = w.shape[1]
    for b in range(x_ref.shape[0]):  # B is small & static: unrolled matmuls
        y_b = jax.lax.dot_general(
            x_ref[b], w, _NN_DNUMS, preferred_element_type=jnp.float32
        )
        # Fused torch.cat(x, dim=1): batch b occupies lanes [b*out3,(b+1)*out3).
        # Static offset; storing immediately keeps only one f32 temporary live
        # (no jnp.concatenate, no B simultaneous pieces).
        o_ref[:, pl.ds(b * out3, out3)] = y_b.astype(o_ref.dtype)
    # NOTE: the reference module also computes sum/mean/max over the node dim
    # and discards them (dead code); they are intentionally not emitted.


def _vmem_limit_bytes():
    """Generation-gated scoped-VMEM limit.

    v5e/v6e have 128 MiB physical VMEM -> 64 MiB limit is safe and lets tiles
    stay on the ~85% HBM-roofline plateau.  v7x has only 64 MiB physical ->
    stay at the 32 MiB scoped default.  Unknown -> conservative.
    """
    phys = None
    try:
        info = pltpu.get_tpu_info()
        phys = getattr(info, "vmem_capacity_bytes", None)
    except Exception:
        phys = None
    if phys is None or phys <= 80 * 1024 * 1024:
        return 32 * 1024 * 1024
    return 64 * 1024 * 1024


def _choose_node_tile(n_nodes, per_row_bytes, fixed_bytes, vmem_limit):
    """Largest sublane-aligned node tile that fits the VMEM model.

    per_row_bytes: bytes of VMEM consumed per node row per grid step (already
    including double buffering of the pipelined blocks and f32 temporaries).
    fixed_bytes: tile-independent residents (the double-buffered weight).
    25% of the limit is left as headroom for Mosaic internal scratch.
    """
    avail = int(vmem_limit * 0.75) - fixed_bytes
    tn = avail // per_row_bytes if per_row_bytes > 0 else n_nodes
    tn = max(8, min(int(tn), 1024))
    tn = (tn // 8) * 8  # sublane-aligned

    # Keep >= ~4 grid steps when N allows: gives the double buffer something to
    # prefetch behind, and >= 2 steps lets v7x shard node tiles across both
    # TensorCores.  512-row tiles already sit at ~85% of HBM roofline, so
    # shrinking the tile for more steps costs essentially nothing.
    cap = max(8, ((pl.cdiv(n_nodes, 4) + 7) // 8) * 8)
    tn = min(tn, cap)

    if tn >= n_nodes:
        tn = n_nodes  # full dim is always a legal block
    return tn


def readout3m_forward(x, weight):
    """x: (B, N, in_dim); weight: (3*out_dim, in_dim) like nn.Linear.weight.

    Returns (N, B * 3*out_dim), matching `torch.cat(fc(x), dim=1)`.
    """
    B, N, in_dim = x.shape
    out3, w_in = weight.shape
    assert w_in == in_dim

    # One-time layout change of a small matrix (essentially free); the kernel
    # then does a plain NN matmul with no per-tile weight re-layout.
    w_t = weight.T  # (in_dim, out3)

    vmem_limit = _vmem_limit_bytes()
    x_bytes = jnp.dtype(x.dtype).itemsize
    w_bytes = jnp.dtype(weight.dtype).itemsize
    o_bytes = x_bytes
    # Weight block has a constant index_map (never re-DMA'd) but is still
    # double-buffered by the default pipeline; charge both buffers here.
    fixed_bytes = 2 * in_dim * out3 * w_bytes

    if out3 % 128 == 0:
        # ---- Fast path: 2-D (node_tile, batch) grid, lane-aligned slabs ----
        per_row = 2 * (in_dim * x_bytes + out3 * o_bytes) + out3 * 4
        tn = _choose_node_tile(N, per_row, fixed_bytes, vmem_limit)
        grid = (pl.cdiv(N, tn), B)
        in_specs = [
            pl.BlockSpec((pl.Squeezed(), tn, in_dim), lambda n, b: (b, n, 0)),
            pl.BlockSpec((in_dim, out3), lambda n, b: (0, 0)),
        ]
        out_specs = pl.BlockSpec((tn, out3), lambda n, b: (n, b))
        kernel = _readout3m_kernel_aligned
        dim_sem = ("parallel", "parallel")
    else:
        # ---- General path: 1-D node grid, per-batch matmul + direct store ----
        per_row = 2 * B * (in_dim * x_bytes + out3 * o_bytes) + out3 * 4
        tn = _choose_node_tile(N, per_row, fixed_bytes, vmem_limit)
        grid = (pl.cdiv(N, tn),)
        in_specs = [
            pl.BlockSpec((B, tn, in_dim), lambda n: (0, n, 0)),
            pl.BlockSpec((in_dim, out3), lambda n: (0, 0)),
        ]
        # Output block covers the full fused row (B*out3): legal for any
        # out_dim and the HBM write of the tile stays contiguous/lane-dense.
        out_specs = pl.BlockSpec((tn, B * out3), lambda n: (n, 0))
        kernel = _readout3m_kernel_general
        dim_sem = ("parallel",)

    return pl.pallas_call(
        kernel,
        out_shape=jax.ShapeDtypeStruct((N, B * out3), x.dtype),
        grid_spec=pltpu.PrefetchScalarGridSpec(
            num_scalar_prefetch=0,
            grid=grid,
            in_specs=in_specs,
            out_specs=out_specs,
        ),
        compiler_params=pltpu.CompilerParams(
            dimension_semantics=dim_sem,
            vmem_limit_bytes=vmem_limit,
        ),
    )(x, w_t)


if __name__ == "__main__":
    key = jax.random.PRNGKey(0)

    def linear_weight(k, out_features, in_features):
        # Deterministic nn.Linear-style init: U(-1/sqrt(in), 1/sqrt(in)).
        bound = 1.0 / (in_features ** 0.5)
        return jax.random.uniform(
            k, (out_features, in_features), dtype=jnp.float32,
            minval=-bound, maxval=bound,
        )

    def reference(x, weight):
        y = jnp.einsum("bni,oi->bno", x, weight)              # Linear, no bias
        B, N, o3 = y.shape
        return jnp.transpose(y, (1, 0, 2)).reshape(N, B * o3)  # torch.cat(y, 1)

    fwd = jax.jit(readout3m_forward)

    # Case 1: general path (out3 = 48, not a lane multiple).
    B, N, in_dim, out_dim = 2, 8, 32, 16
    k1, k2, key = jax.random.split(key, 3)
    x = jax.random.normal(k1, (B, N, in_dim), dtype=jnp.float32)
    w = linear_weight(k2, 3 * out_dim, in_dim)
    out = jax.block_until_ready(fwd(x, w))
    ref = reference(x, w)
    assert out.shape == (N, B * 3 * out_dim), out.shape
    assert jnp.allclose(out, ref, atol=1e-4, rtol=1e-5)

    # Case 2: lane-aligned fast path (out3 = 384), 2-D (node, batch) grid.
    B, N, in_dim, out_dim = 2, 16, 32, 128
    k1, k2, key = jax.random.split(key, 3)
    x = jax.random.normal(k1, (B, N, in_dim), dtype=jnp.float32)
    w = linear_weight(k2, 3 * out_dim, in_dim)
    out = jax.block_until_ready(fwd(x, w))
    ref = reference(x, w)
    assert out.shape == (N, B * 3 * out_dim), out.shape
    assert jnp.allclose(out, ref, atol=1e-4, rtol=1e-5)

    print("KERNEL_OK")
</pallas_src>

<mosaic_0001>
module attributes {stable_mosaic.version = 11 : i64} {
  func.func @_readout3m_kernel_general(%arg0: i32, %arg1: memref<2x8x32xf32, #tpu.memory_space<vmem>>, %arg2: memref<32x48xf32, #tpu.memory_space<vmem>>, %arg3: memref<8x96xf32, #tpu.memory_space<vmem>>) attributes {dimension_semantics = [#tpu.dimension_semantics<parallel>], iteration_bounds = array<i64: 1>, scalar_prefetch = 0 : i64, scratch_operands = 0 : i64, tpu.core_type = #tpu.core_type<tc>, window_params = [{transform_indices = @transform_0, window_bounds = array<i64: 2, 8, 32>}, {pipeline_mode = #tpu.pipeline_mode<synchronous>, transform_indices = @transform_1, window_bounds = array<i64: 32, 48>}, {transform_indices = @transform_2, window_bounds = array<i64: 8, 96>}]} {
    %c0 = arith.constant 0 : index
    %c0_0 = arith.constant 0 : index
    %0 = vector.load %arg2[%c0, %c0_0] : memref<32x48xf32, #tpu.memory_space<vmem>>, vector<32x48xf32>
    %c0_1 = arith.constant 0 : index
    %c0_2 = arith.constant 0 : index
    %c0_3 = arith.constant 0 : index
    %1 = vector.load %arg1[%c0_1, %c0_2, %c0_3] : memref<2x8x32xf32, #tpu.memory_space<vmem>>, vector<1x8x32xf32>
    %2 = vector.shape_cast %1 : vector<1x8x32xf32> to vector<8x32xf32>
    %cst = arith.constant dense<0.000000e+00> : vector<8x48xf32>
    %3 = tpu.matmul %2, %0, %cst {dimension_numbers = #tpu.dot_dimension_numbers<[1], [0], [0], [1], [0, 0, 1, 1], [], []>} : vector<8x32xf32>, vector<32x48xf32>, vector<8x48xf32> -> vector<8x48xf32>
    %c0_4 = arith.constant 0 : index
    %c0_5 = arith.constant 0 : index
    %4 = vector.load %arg3[%c0_4, %c0_5] : memref<8x96xf32, #tpu.memory_space<vmem>>, vector<8x48xf32>
    tpu.vector_store %arg3[%c0_4, %c0_5], %3 {strides = array<i32>} : memref<8x96xf32, #tpu.memory_space<vmem>>, vector<8x48xf32>,
    %c1 = arith.constant 1 : index
    %c0_6 = arith.constant 0 : index
    %c0_7 = arith.constant 0 : index
    %5 = vector.load %arg1[%c1, %c0_6, %c0_7] : memref<2x8x32xf32, #tpu.memory_space<vmem>>, vector<1x8x32xf32>
    %6 = vector.shape_cast %5 : vector<1x8x32xf32> to vector<8x32xf32>
    %cst_8 = arith.constant dense<0.000000e+00> : vector<8x48xf32>
    %7 = tpu.matmul %6, %0, %cst_8 {dimension_numbers = #tpu.dot_dimension_numbers<[1], [0], [0], [1], [0, 0, 1, 1], [], []>} : vector<8x32xf32>, vector<32x48xf32>, vector<8x48xf32> -> vector<8x48xf32>
    %c0_9 = arith.constant 0 : index
    %c48 = arith.constant 48 : index
    %8 = vector.load %arg3[%c0_9, %c48] : memref<8x96xf32, #tpu.memory_space<vmem>>, vector<8x48xf32>
    tpu.vector_store %arg3[%c0_9, %c48], %7 {strides = array<i32>} : memref<8x96xf32, #tpu.memory_space<vmem>>, vector<8x48xf32>,
    return
  }
  func.func @transform_0(%arg0: i32) -> (i32, i32, i32) {
    %c0_i32 = arith.constant 0 : i32
    %c0_i32_0 = arith.constant 0 : i32
    %c0_i32_1 = arith.constant 0 : i32
    return %c0_i32, %arg0, %c0_i32_0 : i32, i32, i32
  }
  func.func @transform_1(%arg0: i32) -> (i32, i32) {
    %c0_i32 = arith.constant 0 : i32
    %c0_i32_0 = arith.constant 0 : i32
    %c0_i32_1 = arith.constant 0 : i32
    return %c0_i32, %c0_i32_0 : i32, i32
  }
  func.func @transform_2(%arg0: i32) -> (i32, i32) {
    %c0_i32 = arith.constant 0 : i32
    %c0_i32_0 = arith.constant 0 : i32
    return %arg0, %c0_i32 : i32, i32
  }
}

</mosaic_0001>

<llo_original>
// kernel: readout3m_forward.1
$region0: #{readout3m_forward.1}
  #allocation0 [shape = 'u32[]', space=smem, size = 0x4, offset = 0x4, fixed_abs, tag = 'smem constant byte address 0x4 - core index']
  #allocation1 [shape = 'u32[144,128]{1,0:T(1,128)}', space=vmem, size = 0x12000, scoped, tag = 'internal scratch']
  %s0 = inlined_call_operand.hbm [shape: f32[2,8,32], index: 0, kind: input, shape index: {}]
  %s1 = inlined_call_operand.hbm [shape: f32[32,48], index: 1, kind: input, shape index: {}]
  %s2 = inlined_call_operand.hbm [shape: f32[8,96], index: 2, kind: output, shape index: {}]
  %s3 = sld [smem:[#allocation0]]
  $region26: #{readout3m_forward.1} parent=0
    _
  %s5 = ssub.s32 1, %s3
  %s6 = scalar_select 0, %s5, %s3
  $region1: #{readout3m_forward.1} parent=0
    #allocation2 [shape = 'u8[8192]{0}', space=vmem, size = 0x2000, scoped, tag = 'input window, operand 0, single buffered']
    #allocation3 [shape = 's32[1]{0}', space=sflag, size = 0x4, scoped, tag = 'scoped memory for readout3m_forward.1']
    #allocation4 [shape = 's32[1]{0}', space=sflag, size = 0x4, scoped, tag = 'scoped memory for readout3m_forward.1']
    #allocation5 [shape = 'u8[16384]{0}', space=vmem, size = 0x4000, scoped, tag = 'input window, operand 1, single buffered']
    #allocation6 [shape = 's32[1]{0}', space=sflag, size = 0x4, scoped, tag = 'scoped memory for readout3m_forward.1']
    #allocation7 [shape = 'u8[4096]{0}', space=vmem, size = 0x1000, scoped, tag = 'output window, operand 0, single buffered']
    %7 = vsyncpa [#allocation3], 0
    %8 = vsyncpa [#allocation6], 0
    %9 = vsyncpa [#allocation4], 0
    // Predicated region
    $region2: #{readout3m_forward.1} parent=1 // pred_check
      _
    $region3: #{readout3m_forward.1} parent=1 // pred_check_branch
      %11 = sbr.rel (0) target = $region5
    $region4: #{readout3m_forward.1} parent=1 // pred_region
      %s13 = ssub.s32 256, 256
      %14 = vsyncadd [#allocation3], %s13
      %s15 = sshll.u32 [#allocation2], 4
      %s16 = int_to_ptr.vmem [resolvable:$true] %s15
      %21 = dma.hbm_to_vmem [thread:$0]  %s0, 256, %s16, [#allocation3], 128, 128, 8
    $region5: #{readout3m_forward.1} parent=1 // pred_fallthru
      _
    // Predicated region
    $region6: #{readout3m_forward.1} parent=1 // pred_check
      _
    $region7: #{readout3m_forward.1} parent=1 // pred_check_branch
      %23 = sbr.rel (0) target = $region9
    $region8: #{readout3m_forward.1} parent=1 // pred_region
      %s25 = ssub.s32 512, 512
      %26 = vsyncadd [#allocation6], %s25
      %s27 = sshll.u32 [#allocation5], 4
      %s28 = int_to_ptr.vmem [resolvable:$true] %s27
      %33 = dma.hbm_to_vmem [thread:$0]  %s1, 512, %s28, [#allocation6], 128, 128, 8
    $region9: #{readout3m_forward.1} parent=1 // pred_fallthru
      _
    // Predicated region
    $region10: #{readout3m_forward.1} parent=1 // pred_check
      _
    $region11: #{readout3m_forward.1} parent=1 // pred_check_branch
      %35 = sbr.rel (0) target = $region13
    $region12: #{readout3m_forward.1} parent=1 // pred_region
      %36 = dma.done [#allocation3], 256
    $region13: #{readout3m_forward.1} parent=1 // pred_fallthru
      _
    // Predicated region
    $region14: #{readout3m_forward.1} parent=1 // pred_check
      _
    $region15: #{readout3m_forward.1} parent=1 // pred_check_branch
      %38 = sbr.rel (0) target = $region17
    $region16: #{readout3m_forward.1} parent=1 // pred_region
      %39 = dma.done [#allocation6], 512
    $region17: #{readout3m_forward.1} parent=1 // pred_fallthru
      _
    %v40 = vld [vmem:[#allocation5] sm:$0xff]
    %v41 = vld [vmem:[#allocation5 + $0x8] sm:$0xff]
    %v42 = vld [vmem:[#allocation5 + $0x10] sm:$0xff]
    %v43 = vld [vmem:[#allocation5 + $0x18] sm:$0xff]
    %v44 = vld [vmem:[#allocation2] sm:$0xff]
    %vm45 = vcmask 261120
    %v47 = vsel %vm45, %v44, 0
    %49 = vmatprep.subr.mxu0 0.0
    %50 = vmatpush1.msra.mxu0 0.0
    %51 = vmatprep.subr.mxu0 0.0
    %52 = vmatpush1.msra.mxu0 0.0
    %53 = vmatprep.subr.mxu0 0.0
    %54 = vmatpush1.msra.mxu0 0.0
    %55 = vmatprep.subr.mxu0 0.0
    %56 = vmatpush1.msra.mxu0 0.0
    %57 = vmatprep.subr.mxu0 0.0
    %58 = vmatpush1.msra.mxu0 0.0
    %59 = vmatprep.subr.mxu0 0.0
    %60 = vmatpush1.msra.mxu0 0.0
    %61 = vmatprep.subr.mxu0 0.0
    %62 = vmatpush1.msra.mxu0 0.0
    %63 = vmatprep.subr.mxu0 0.0
    %64 = vmatpush1.msra.mxu0 0.0
    %65 = vmatprep.subr.mxu0 0.0
    %66 = vmatpush1.msra.mxu0 0.0
    %67 = vmatprep.subr.mxu0 0.0
    %68 = vmatpush1.msra.mxu0 0.0
    %69 = vmatprep.subr.mxu0 0.0
    %70 = vmatpush1.msra.mxu0 0.0
    %71 = vmatprep.subr.mxu0 0.0
    %72 = vmatpush1.msra.mxu0 0.0
    %73 = vmatprep.subr.mxu0 0.0
    %74 = vmatpush1.msra.mxu0 %v43
    %75 = vmatprep.subr.mxu0 0.0
    %76 = vmatpush1.msra.mxu0 %v42
    %77 = vmatprep.subr.mxu0 0.0
    %78 = vmatpush1.msra.mxu0 %v41
    %79 = vmatprep.subr.mxu0 0.0
    %80 = vmatpush1.msra.mxu0 %v40
    %81 = vmatprep.subr.mxu0 0.0
    %82 = vmatpush2.msra.mxu0 0.0
    %83 = vmatprep.subr.mxu0 0.0
    %84 = vmatpush2.msra.mxu0 0.0
    %85 = vmatprep.subr.mxu0 0.0
    %86 = vmatpush2.msra.mxu0 0.0
    %87 = vmatprep.subr.mxu0 0.0
    %88 = vmatpush2.msra.mxu0 0.0
    %89 = vmatprep.subr.mxu0 0.0
    %90 = vmatpush2.msra.mxu0 0.0
    %91 = vmatprep.subr.mxu0 0.0
    %92 = vmatpush2.msra.mxu0 0.0
    %93 = vmatprep.subr.mxu0 0.0
    %94 = vmatpush2.msra.mxu0 0.0
    %95 = vmatprep.subr.mxu0 0.0
    %96 = vmatpush2.msra.mxu0 0.0
    %97 = vmatprep.subr.mxu0 0.0
    %98 = vmatpush2.msra.mxu0 0.0
    %99 = vmatprep.subr.mxu0 0.0
    %100 = vmatpush2.msra.mxu0 0.0
    %101 = vmatprep.subr.mxu0 0.0
    %102 = vmatpush2.msra.mxu0 0.0
    %103 = vmatprep.subr.mxu0 0.0
    %104 = vmatpush2.msra.mxu0 0.0
    %105 = vmatprep.subr.mxu0 0.0
    %106 = vmatpush2.msra.mxu0 0.0
    %107 = vmatprep.subr.mxu0 0.0
    %108 = vmatpush2.msra.mxu0 0.0
    %109 = vmatprep.subr.mxu0 0.0
    %110 = vmatpush2.msra.mxu0 0.0
    %111 = vmatprep.subr.mxu0 0.0
    %112 = vmatpush2.msra.mxu0 0.0
    %113 = vmatprep.mubr.f32.mxu0 0.0
    %114 = vmatmul.mubr.f32.gmra.mxu0 %v47
    %v115 = vpop.f32.mrf.mxu0
    %v116 = vadd.f32 0.0, %v115
    %v117 = vpop.f32.mrf.mxu0
    %118 = vdwg.mxu0
    %vm119 = vcmask 392192
    %120 = vst.msk [vmem:[#allocation7] sm:$0xff] %vm119, %v116
    %s121 = scalar_lea.vmem [#allocation2], 8
    %v122 = vld [vmem:[%s121] sm:$0xff]
    %v124 = vsel %vm45, %v122, 0
    %126 = vmatprep.subr.mxu0 0.0
    %127 = vmatpush1.msra.mxu0 0.0
    %128 = vmatprep.subr.mxu0 0.0
    %129 = vmatpush1.msra.mxu0 0.0
    %130 = vmatprep.subr.mxu0 0.0
    %131 = vmatpush1.msra.mxu0 0.0
    %132 = vmatprep.subr.mxu0 0.0
    %133 = vmatpush1.msra.mxu0 0.0
    %134 = vmatprep.subr.mxu0 0.0
    %135 = vmatpush1.msra.mxu0 0.0
    %136 = vmatprep.subr.mxu0 0.0
    %137 = vmatpush1.msra.mxu0 0.0
    %138 = vmatprep.subr.mxu0 0.0
    %139 = vmatpush1.msra.mxu0 0.0
    %140 = vmatprep.subr.mxu0 0.0
    %141 = vmatpush1.msra.mxu0 0.0
    %142 = vmatprep.subr.mxu0 0.0
    %143 = vmatpush1.msra.mxu0 0.0
    %144 = vmatprep.subr.mxu0 0.0
    %145 = vmatpush1.msra.mxu0 0.0
    %146 = vmatprep.subr.mxu0 0.0
    %147 = vmatpush1.msra.mxu0 0.0
    %148 = vmatprep.subr.mxu0 0.0
    %149 = vmatpush1.msra.mxu0 0.0
    %150 = vmatprep.subr.mxu0 0.0
    %151 = vmatpush1.msra.mxu0 %v43
    %152 = vmatprep.subr.mxu0 0.0
    %153 = vmatpush1.msra.mxu0 %v42
    %154 = vmatprep.subr.mxu0 0.0
    %155 = vmatpush1.msra.mxu0 %v41
    %156 = vmatprep.subr.mxu0 0.0
    %157 = vmatpush1.msra.mxu0 %v40
    %158 = vmatprep.subr.mxu0 0.0
    %159 = vmatpush2.msra.mxu0 0.0
    %160 = vmatprep.subr.mxu0 0.0
    %161 = vmatpush2.msra.mxu0 0.0
    %162 = vmatprep.subr.mxu0 0.0
    %163 = vmatpush2.msra.mxu0 0.0
    %164 = vmatprep.subr.mxu0 0.0
    %165 = vmatpush2.msra.mxu0 0.0
    %166 = vmatprep.subr.mxu0 0.0
    %167 = vmatpush2.msra.mxu0 0.0
    %168 = vmatprep.subr.mxu0 0.0
    %169 = vmatpush2.msra.mxu0 0.0
    %170 = vmatprep.subr.mxu0 0.0
    %171 = vmatpush2.msra.mxu0 0.0
    %172 = vmatprep.subr.mxu0 0.0
    %173 = vmatpush2.msra.mxu0 0.0
    %174 = vmatprep.subr.mxu0 0.0
    %175 = vmatpush2.msra.mxu0 0.0
    %176 = vmatprep.subr.mxu0 0.0
    %177 = vmatpush2.msra.mxu0 0.0
    %178 = vmatprep.subr.mxu0 0.0
    %179 = vmatpush2.msra.mxu0 0.0
    %180 = vmatprep.subr.mxu0 0.0
    %181 = vmatpush2.msra.mxu0 0.0
    %182 = vmatprep.subr.mxu0 0.0
    %183 = vmatpush2.msra.mxu0 0.0
    %184 = vmatprep.subr.mxu0 0.0
    %185 = vmatpush2.msra.mxu0 0.0
    %186 = vmatprep.subr.mxu0 0.0
    %187 = vmatpush2.msra.mxu0 0.0
    %188 = vmatprep.subr.mxu0 0.0
    %189 = vmatpush2.msra.mxu0 0.0
    %190 = vmatprep.mubr.f32.mxu0 0.0
    %191 = vmatmul.mubr.f32.gmra.mxu0 %v124
    %v192 = vpop.f32.mrf.mxu0
    %v193 = vadd.f32 0.0, %v192
    %v194 = vpop.f32.mrf.mxu0
    %195 = vdwg.mxu0
    %197 = vrot.lane.b32.xlu0 %v193, 48
    %v198 = vpop.permute.xlu0 %197
    %vm200 = vcmask 785792
    %201 = vst.msk [vmem:[#allocation7] sm:$0xff] %vm200, %v198
    // Predicated region
    $region18: #{readout3m_forward.1} parent=1 // pred_check
      _
    $region19: #{readout3m_forward.1} parent=1 // pred_check_branch
      %203 = sbr.rel (0) target = $region21
    $region20: #{readout3m_forward.1} parent=1 // pred_region
      %s205 = ssub.s32 128, 128
      %206 = vsyncadd [#allocation4], %s205
      %s208 = sshll.u32 [#allocation7], 4
      %s209 = int_to_ptr.vmem [resolvable:$true] %s208
      %211 = dma.vmem_to_hbm [thread:$0]  %s209, 128, %s2, [#allocation4]
    $region21: #{readout3m_forward.1} parent=1 // pred_fallthru
      _
    // Predicated region
    $region22: #{readout3m_forward.1} parent=1 // pred_check
      _
    $region23: #{readout3m_forward.1} parent=1 // pred_check_branch
      %213 = sbr.rel (0) target = $region25
    $region24: #{readout3m_forward.1} parent=1 // pred_region
      %214 = dma.done [#allocation4], 128
    $region25: #{readout3m_forward.1} parent=1 // pred_fallthru
      _
    %215 = vsyncpa [#allocation3], 1
    %216 = vsyncpa [#allocation6], 1
    %217 = vsyncpa [#allocation4], 1

</llo_original>
